<compile_context>
chip_gen: v5e
topology: v5e:2x2
jax: 0.10.0
libtpu: 0.0.40
codegen_flags: <defaults>
</compile_context>

<pallas_src>
import functools

import jax
import jax.numpy as jnp
from jax.experimental import pallas as pl
from jax.experimental.pallas import tpu as pltpu


def _round_up(x, m):
    return (x + m - 1) // m * m


def _elu(x, alpha):
    # torch.nn.ELU: x if x > 0 else alpha * (exp(x) - 1).
    # Clamp the exp argument so the discarded branch never produces inf.
    return jnp.where(x > 0, x, alpha * (jnp.exp(jnp.minimum(x, 0.0)) - 1.0))


def _vmem_limit_bytes():
    # Generation-aware scoped-VMEM limit: ~75% of physical VMEM
    # (v7x: 64 MiB -> 48 MiB, v5e/v6e: 128 MiB -> 96 MiB), capped at 100 MiB.
    cap = 64 * 1024 * 1024
    try:
        cap = int(getattr(pltpu.get_tpu_info(), "vmem_capacity_bytes", cap))
    except Exception:
        pass
    return int(min(cap * 3 // 4, 100 * 1024 * 1024))


def _pick_tile_f(out_p):
    # Largest lane-dense (multiple-of-128) tile dividing OUT_P, capped at 512;
    # prefer leaving >= 2 feature tiles so both v7x TensorCores get softmax work.
    cands = [t for t in range(128, min(512, out_p) + 1, 128) if out_p % t == 0]
    best = cands[-1]
    if best == out_p and out_p > 128:
        smaller = [t for t in cands if t < out_p]
        if smaller:
            best = smaller[-1]
    return best


# ---------------------------------------------------------------------------
# Fused kernel: 3-layer MLP + Softmax(dim=0) over the (whole, resident) batch.
# Used whenever B <= 512 so the batch fits a single tile.  bf16 MXU operands,
# f32 accumulation / activations / softmax.  Padded batch rows masked out.
# ---------------------------------------------------------------------------
def mlp_softmax_kernel(x_ref, w1_ref, b1_ref, w2_ref, b2_ref, w3_ref, b3_ref,
                       o_ref, *, valid_rows):
    x = x_ref[...]                                                  # bf16 (B_P, IN_P)

    # Linear(input, hidden) + ELU(alpha=0.95)
    h = jnp.dot(x, w1_ref[...], preferred_element_type=jnp.float32) + b1_ref[...]
    h = _elu(h, 0.95)                                               # f32

    # Linear(hidden, hidden) + ReLU
    h = jnp.dot(h.astype(jnp.bfloat16), w2_ref[...],
                preferred_element_type=jnp.float32) + b2_ref[...]
    h = jnp.maximum(h, 0.0)                                         # f32

    # Linear(hidden, output) + ELU(alpha=1.25)
    h = jnp.dot(h.astype(jnp.bfloat16), w3_ref[...],
                preferred_element_type=jnp.float32) + b3_ref[...]
    h = _elu(h, 1.25)                                               # f32 logits

    # Softmax over dim=0 (batch); mask padded batch rows so they never contribute.
    rows = jax.lax.broadcasted_iota(jnp.int32, h.shape, 0)
    h = jnp.where(rows < valid_rows, h, -1e30)
    m = jnp.max(h, axis=0, keepdims=True)
    e = jnp.exp(h - m)
    denom = jnp.sum(e, axis=0, keepdims=True)
    o_ref[...] = e * pl.reciprocal(denom, approx=True)


# ---------------------------------------------------------------------------
# Unfused path (B > 512): kernel 1 = MLP tiled over batch (bf16 logits out).
# ---------------------------------------------------------------------------
def mlp_kernel(x_ref, w1_ref, b1_ref, w2_ref, b2_ref, w3_ref, b3_ref, o_ref):
    x = x_ref[...]                                                  # bf16 (TILE_B, IN_P)
    h = jnp.dot(x, w1_ref[...], preferred_element_type=jnp.float32) + b1_ref[...]
    h = _elu(h, 0.95)
    h = jnp.dot(h.astype(jnp.bfloat16), w2_ref[...],
                preferred_element_type=jnp.float32) + b2_ref[...]
    h = jnp.maximum(h, 0.0)
    h = jnp.dot(h.astype(jnp.bfloat16), w3_ref[...],
                preferred_element_type=jnp.float32) + b3_ref[...]
    # bf16 intermediate logits: halves the write+read HBM traffic between kernels.
    o_ref[...] = _elu(h, 1.25).astype(o_ref.dtype)


# ---------------------------------------------------------------------------
# Unfused path: kernel 2 = softmax over dim=0 (batch).  Batch is the reduction
# axis, so it stays whole per block; we tile over the lane-dense feature axis.
# ---------------------------------------------------------------------------
def softmax_dim0_kernel(h_ref, o_ref, *, valid_rows):
    h = h_ref[...].astype(jnp.float32)                              # (B_P, TILE_F)
    rows = jax.lax.broadcasted_iota(jnp.int32, h.shape, 0)
    h = jnp.where(rows < valid_rows, h, -1e30)
    m = jnp.max(h, axis=0, keepdims=True)
    e = jnp.exp(h - m)
    denom = jnp.sum(e, axis=0, keepdims=True)
    o_ref[...] = e * pl.reciprocal(denom, approx=True)


def prepare_params(params):
    """One-time weight prep (hoisted out of the per-call path): pad feature dims to
    lane-dense multiples of 128 and cast matmul operands to bf16 (f32 biases)."""
    w1, b1, w2, b2, w3, b3 = params
    IN, HID = w1.shape
    OUT = w3.shape[1]
    IN_P, HID_P, OUT_P = _round_up(IN, 128), _round_up(HID, 128), _round_up(OUT, 128)
    # TODO(synk): for large HID on v6e/v7x (2x 256x256 MXU), pad contraction dims to
    # multiples of 256 instead of 128.
    f32, bf16 = jnp.float32, jnp.bfloat16
    w1p = jnp.pad(w1.astype(bf16), ((0, IN_P - IN), (0, HID_P - HID)))
    w2p = jnp.pad(w2.astype(bf16), ((0, HID_P - HID), (0, HID_P - HID)))
    w3p = jnp.pad(w3.astype(bf16), ((0, HID_P - HID), (0, OUT_P - OUT)))
    b1p = jnp.pad(b1.astype(f32), ((0, 0), (0, HID_P - HID)))
    b2p = jnp.pad(b2.astype(f32), ((0, 0), (0, HID_P - HID)))
    b3p = jnp.pad(b3.astype(f32), ((0, 0), (0, OUT_P - OUT)))
    return (w1p, b1p, w2p, b2p, w3p, b3p)


@functools.partial(jax.jit, static_argnames=("out_features",))
def mynn_forward(x, padded_params, out_features):
    w1p, b1p, w2p, b2p, w3p, b3p = padded_params
    B, IN = x.shape
    IN_P, HID_P = w1p.shape
    OUT_P = w3p.shape[1]
    f32, bf16 = jnp.float32, jnp.bfloat16

    vmem_limit = _vmem_limit_bytes()
    # Weights/biases stay VMEM-resident across batch tiles (constant block index).
    # TODO(synk): for HID_P >= ~2048 on v7x (64 MiB VMEM), single-buffer the resident
    # weights (pipeline_mode=pl.Buffered(1)) or K-tile W2 with an f32 accumulator.
    resident = lambda shape: pl.BlockSpec(shape, lambda i: (0, 0))
    weight_specs = [
        resident((IN_P, HID_P)), resident((1, HID_P)),
        resident((HID_P, HID_P)), resident((1, HID_P)),
        resident((HID_P, OUT_P)), resident((1, OUT_P)),
    ]

    TILE_B_MAX = 512
    if B <= TILE_B_MAX:
        # ---- Fused single pallas_call: MLP + softmax(dim=0) over the resident batch.
        # Saves a kernel launch and the logits HBM round trip (dominant at small B).
        B_P = _round_up(B, 8)
        xp = jnp.pad(x.astype(bf16), ((0, B_P - B), (0, IN_P - IN)))
        probs = pl.pallas_call(
            functools.partial(mlp_softmax_kernel, valid_rows=B),
            out_shape=jax.ShapeDtypeStruct((B_P, OUT_P), f32),
            grid=(1,),
            in_specs=[pl.BlockSpec((B_P, IN_P), lambda i: (0, 0))] + weight_specs,
            out_specs=pl.BlockSpec((B_P, OUT_P), lambda i: (0, 0)),
            compiler_params=pltpu.CompilerParams(
                dimension_semantics=("arbitrary",),
                vmem_limit_bytes=vmem_limit),
        )(xp, w1p, b1p, w2p, b2p, w3p, b3p)
        return probs[:B, :out_features]

    # ---- Two-kernel path for B > 512: >= 2 batch tiles (both v7x TCs get MLP work).
    TILE_B = TILE_B_MAX
    B_P = _round_up(B, TILE_B)
    xp = jnp.pad(x.astype(bf16), ((0, B_P - B), (0, IN_P - IN)))

    logits = pl.pallas_call(
        mlp_kernel,
        out_shape=jax.ShapeDtypeStruct((B_P, OUT_P), bf16),
        grid=(B_P // TILE_B,),
        in_specs=[pl.BlockSpec((TILE_B, IN_P), lambda i: (i, 0))] + weight_specs,
        out_specs=pl.BlockSpec((TILE_B, OUT_P), lambda i: (i, 0)),
        compiler_params=pltpu.CompilerParams(
            dimension_semantics=("parallel",),
            vmem_limit_bytes=vmem_limit),
    )(xp, w1p, b1p, w2p, b2p, w3p, b3p)

    # Softmax over the batch axis (torch Softmax(dim=0)), tiled over features with
    # large lane-dense blocks (memory-bound pass).
    # TODO(synk): for very large B (batch-resident block nearing the VMEM limit,
    # ~20K rows on v7x), switch to a two-pass running max/sum over batch tiles.
    TILE_F = _pick_tile_f(OUT_P)
    probs = pl.pallas_call(
        functools.partial(softmax_dim0_kernel, valid_rows=B),
        out_shape=jax.ShapeDtypeStruct((B_P, OUT_P), f32),
        grid=(OUT_P // TILE_F,),
        in_specs=[pl.BlockSpec((B_P, TILE_F), lambda j: (0, j))],
        out_specs=pl.BlockSpec((B_P, TILE_F), lambda j: (0, j)),
        compiler_params=pltpu.CompilerParams(
            dimension_semantics=("parallel",),
            vmem_limit_bytes=vmem_limit),
    )(logits)

    return probs[:B, :out_features]


def init_params(key, input_size, hidden_size, output_size):
    # Deterministic synthetic init (mimics torch.nn.Linear's uniform(-1/sqrt(fan_in), ...))
    ks = jax.random.split(key, 6)

    def lin(kw, kb, fan_in, fan_out):
        bound = 1.0 / jnp.sqrt(fan_in)
        w = jax.random.uniform(kw, (fan_in, fan_out), jnp.float32, -bound, bound)
        b = jax.random.uniform(kb, (1, fan_out), jnp.float32, -bound, bound)
        return w, b

    w1, b1 = lin(ks[0], ks[1], input_size, hidden_size)
    w2, b2 = lin(ks[2], ks[3], hidden_size, hidden_size)
    w3, b3 = lin(ks[4], ks[5], hidden_size, output_size)
    return (w1, b1, w2, b2, w3, b3)


def reference_forward(x, params, matmul_dtype=jnp.float32):
    w1, b1, w2, b2, w3, b3 = params
    c = lambda a: a.astype(matmul_dtype)
    h = _elu(jnp.dot(c(x), c(w1), preferred_element_type=jnp.float32) + b1, 0.95)
    h = jnp.maximum(jnp.dot(c(h), c(w2), preferred_element_type=jnp.float32) + b2, 0.0)
    h = _elu(jnp.dot(c(h), c(w3), preferred_element_type=jnp.float32) + b3, 1.25)
    return jax.nn.softmax(h, axis=0)


if __name__ == "__main__":
    input_size, hidden_size, output_size = 32, 32, 16
    batch = 8

    key = jax.random.PRNGKey(0)
    kx, kp = jax.random.split(key)
    x = jax.random.normal(kx, (batch, input_size), jnp.float32)
    params = init_params(kp, input_size, hidden_size, output_size)

    padded_params = prepare_params(params)          # one-time weight prep (hoisted)
    out = jax.block_until_ready(mynn_forward(x, padded_params, output_size))
    assert out.shape == (batch, output_size)

    # Check against a reference that mirrors the kernel's bf16 matmul numerics (tight),
    # and against the pure-f32 reference (loose, covers bf16 quantization error).
    ref_bf16 = reference_forward(x, params, matmul_dtype=jnp.bfloat16)
    ref_f32 = reference_forward(x, params, matmul_dtype=jnp.float32)
    assert jnp.allclose(out, ref_bf16, atol=2e-3, rtol=2e-3), \
        float(jnp.max(jnp.abs(out - ref_bf16)))
    assert jnp.allclose(out, ref_f32, atol=3e-2, rtol=3e-2), \
        float(jnp.max(jnp.abs(out - ref_f32)))

    print("KERNEL_OK")
</pallas_src>

<mosaic_0001>
module attributes {stable_mosaic.version = 11 : i64} {
  func.func @mlp_softmax_kernel(%arg0: i32, %arg1: memref<8x128xbf16, #tpu.memory_space<vmem>>, %arg2: memref<128x128xbf16, #tpu.memory_space<vmem>>, %arg3: memref<1x128xf32, #tpu.memory_space<vmem>>, %arg4: memref<128x128xbf16, #tpu.memory_space<vmem>>, %arg5: memref<1x128xf32, #tpu.memory_space<vmem>>, %arg6: memref<128x128xbf16, #tpu.memory_space<vmem>>, %arg7: memref<1x128xf32, #tpu.memory_space<vmem>>, %arg8: memref<8x128xf32, #tpu.memory_space<vmem>>) attributes {dimension_semantics = [#tpu.dimension_semantics<arbitrary>], iteration_bounds = array<i64: 1>, scalar_prefetch = 0 : i64, scratch_operands = 0 : i64, tpu.core_type = #tpu.core_type<tc>, window_params = [{pipeline_mode = #tpu.pipeline_mode<synchronous>, transform_indices = @transform_0, window_bounds = array<i64: 8, 128>}, {pipeline_mode = #tpu.pipeline_mode<synchronous>, transform_indices = @transform_1, window_bounds = array<i64: 128, 128>}, {pipeline_mode = #tpu.pipeline_mode<synchronous>, transform_indices = @transform_2, window_bounds = array<i64: 1, 128>}, {pipeline_mode = #tpu.pipeline_mode<synchronous>, transform_indices = @transform_3, window_bounds = array<i64: 128, 128>}, {pipeline_mode = #tpu.pipeline_mode<synchronous>, transform_indices = @transform_4, window_bounds = array<i64: 1, 128>}, {pipeline_mode = #tpu.pipeline_mode<synchronous>, transform_indices = @transform_5, window_bounds = array<i64: 128, 128>}, {pipeline_mode = #tpu.pipeline_mode<synchronous>, transform_indices = @transform_6, window_bounds = array<i64: 1, 128>}, {pipeline_mode = #tpu.pipeline_mode<synchronous>, transform_indices = @transform_7, window_bounds = array<i64: 8, 128>}]} {
    %c0 = arith.constant 0 : index
    %c0_0 = arith.constant 0 : index
    %0 = vector.load %arg1[%c0, %c0_0] : memref<8x128xbf16, #tpu.memory_space<vmem>>, vector<8x128xbf16>
    %c0_1 = arith.constant 0 : index
    %c0_2 = arith.constant 0 : index
    %1 = vector.load %arg2[%c0_1, %c0_2] : memref<128x128xbf16, #tpu.memory_space<vmem>>, vector<128x128xbf16>
    %cst = arith.constant dense<0.000000e+00> : vector<8x128xf32>
    %2 = tpu.matmul %0, %1, %cst {dimension_numbers = #tpu.dot_dimension_numbers<[1], [0], [0], [1], [0, 0, 1, 1], [], []>} : vector<8x128xbf16>, vector<128x128xbf16>, vector<8x128xf32> -> vector<8x128xf32>
    %c0_3 = arith.constant 0 : index
    %c0_4 = arith.constant 0 : index
    %3 = vector.load %arg3[%c0_3, %c0_4] : memref<1x128xf32, #tpu.memory_space<vmem>>, vector<1x128xf32>
    %4 = vector.broadcast %3 : vector<1x128xf32> to vector<8x128xf32>
    %5 = arith.addf %2, %4 : vector<8x128xf32>
    %cst_5 = arith.constant 0.000000e+00 : f32
    %6 = vector.broadcast %cst_5 : f32 to vector<8x128xf32>
    %7 = arith.cmpf ogt, %5, %6 : vector<8x128xf32>
    %cst_6 = arith.constant 0.000000e+00 : f32
    %8 = vector.broadcast %cst_6 : f32 to vector<8x128xf32>
    %9 = arith.minimumf %5, %8 : vector<8x128xf32>
    %10 = math.exp %9 : vector<8x128xf32>
    %cst_7 = arith.constant 1.000000e+00 : f32
    %11 = vector.broadcast %cst_7 : f32 to vector<8x128xf32>
    %12 = arith.subf %10, %11 : vector<8x128xf32>
    %cst_8 = arith.constant 0.949999988 : f32
    %13 = vector.broadcast %cst_8 : f32 to vector<8x128xf32>
    %14 = arith.mulf %13, %12 : vector<8x128xf32>
    %15 = arith.select %7, %5, %14 : vector<8x128xi1>, vector<8x128xf32>
    %16 = arith.truncf %15 : vector<8x128xf32> to vector<8x128xbf16>
    %c0_9 = arith.constant 0 : index
    %c0_10 = arith.constant 0 : index
    %17 = vector.load %arg4[%c0_9, %c0_10] : memref<128x128xbf16, #tpu.memory_space<vmem>>, vector<128x128xbf16>
    %cst_11 = arith.constant dense<0.000000e+00> : vector<8x128xf32>
    %18 = tpu.matmul %16, %17, %cst_11 {dimension_numbers = #tpu.dot_dimension_numbers<[1], [0], [0], [1], [0, 0, 1, 1], [], []>} : vector<8x128xbf16>, vector<128x128xbf16>, vector<8x128xf32> -> vector<8x128xf32>
    %c0_12 = arith.constant 0 : index
    %c0_13 = arith.constant 0 : index
    %19 = vector.load %arg5[%c0_12, %c0_13] : memref<1x128xf32, #tpu.memory_space<vmem>>, vector<1x128xf32>
    %20 = vector.broadcast %19 : vector<1x128xf32> to vector<8x128xf32>
    %21 = arith.addf %18, %20 : vector<8x128xf32>
    %cst_14 = arith.constant 0.000000e+00 : f32
    %22 = vector.broadcast %cst_14 : f32 to vector<8x128xf32>
    %23 = arith.maximumf %21, %22 : vector<8x128xf32>
    %24 = arith.truncf %23 : vector<8x128xf32> to vector<8x128xbf16>
    %c0_15 = arith.constant 0 : index
    %c0_16 = arith.constant 0 : index
    %25 = vector.load %arg6[%c0_15, %c0_16] : memref<128x128xbf16, #tpu.memory_space<vmem>>, vector<128x128xbf16>
    %cst_17 = arith.constant dense<0.000000e+00> : vector<8x128xf32>
    %26 = tpu.matmul %24, %25, %cst_17 {dimension_numbers = #tpu.dot_dimension_numbers<[1], [0], [0], [1], [0, 0, 1, 1], [], []>} : vector<8x128xbf16>, vector<128x128xbf16>, vector<8x128xf32> -> vector<8x128xf32>
    %c0_18 = arith.constant 0 : index
    %c0_19 = arith.constant 0 : index
    %27 = vector.load %arg7[%c0_18, %c0_19] : memref<1x128xf32, #tpu.memory_space<vmem>>, vector<1x128xf32>
    %28 = vector.broadcast %27 : vector<1x128xf32> to vector<8x128xf32>
    %29 = arith.addf %26, %28 : vector<8x128xf32>
    %cst_20 = arith.constant 0.000000e+00 : f32
    %30 = vector.broadcast %cst_20 : f32 to vector<8x128xf32>
    %31 = arith.cmpf ogt, %29, %30 : vector<8x128xf32>
    %cst_21 = arith.constant 0.000000e+00 : f32
    %32 = vector.broadcast %cst_21 : f32 to vector<8x128xf32>
    %33 = arith.minimumf %29, %32 : vector<8x128xf32>
    %34 = math.exp %33 : vector<8x128xf32>
    %cst_22 = arith.constant 1.000000e+00 : f32
    %35 = vector.broadcast %cst_22 : f32 to vector<8x128xf32>
    %36 = arith.subf %34, %35 : vector<8x128xf32>
    %cst_23 = arith.constant 1.250000e+00 : f32
    %37 = vector.broadcast %cst_23 : f32 to vector<8x128xf32>
    %38 = arith.mulf %37, %36 : vector<8x128xf32>
    %39 = arith.select %31, %29, %38 : vector<8x128xi1>, vector<8x128xf32>
    %40 = tpu.iota {dimensions = array<i32: 0>} : vector<8x128xi32>
    %c8_i32 = arith.constant 8 : i32
    %41 = vector.broadcast %c8_i32 : i32 to vector<8x128xi32>
    %42 = arith.cmpi slt, %40, %41 : vector<8x128xi32>
    %cst_24 = arith.constant -1.000000e+30 : f32
    %43 = vector.broadcast %cst_24 : f32 to vector<8x128xf32>
    %44 = arith.select %42, %39, %43 : vector<8x128xi1>, vector<8x128xf32>
    %cst_25 = arith.constant dense<0xFF800000> : vector<128xf32>
    %45 = vector.multi_reduction <maximumf>, %44, %cst_25 [0] : vector<8x128xf32> to vector<128xf32>
    %46 = vector.shape_cast %45 : vector<128xf32> to vector<1x128xf32>
    %47 = vector.broadcast %46 : vector<1x128xf32> to vector<8x128xf32>
    %48 = arith.subf %44, %47 : vector<8x128xf32>
    %49 = math.exp %48 : vector<8x128xf32>
    %cst_26 = arith.constant dense<0.000000e+00> : vector<128xf32>
    %50 = vector.multi_reduction <add>, %49, %cst_26 [0] : vector<8x128xf32> to vector<128xf32>
    %51 = vector.shape_cast %50 : vector<128xf32> to vector<1x128xf32>
    %52 = tpu.reciprocal %51 {approx = true} : vector<1x128xf32> -> vector<1x128xf32>
    %53 = vector.broadcast %52 : vector<1x128xf32> to vector<8x128xf32>
    %54 = arith.mulf %49, %53 : vector<8x128xf32>
    %c0_27 = arith.constant 0 : index
    %c0_28 = arith.constant 0 : index
    %55 = vector.load %arg8[%c0_27, %c0_28] : memref<8x128xf32, #tpu.memory_space<vmem>>, vector<8x128xf32>
    tpu.vector_store %arg8[%c0_27, %c0_28], %54 {strides = array<i32>} : memref<8x128xf32, #tpu.memory_space<vmem>>, vector<8x128xf32>,
    return
  }
  func.func @transform_0(%arg0: i32) -> (i32, i32) {
    %c0_i32 = arith.constant 0 : i32
    %c0_i32_0 = arith.constant 0 : i32
    %c0_i32_1 = arith.constant 0 : i32
    return %c0_i32, %c0_i32_0 : i32, i32
  }
  func.func @transform_1(%arg0: i32) -> (i32, i32) {
    %c0_i32 = arith.constant 0 : i32
    %c0_i32_0 = arith.constant 0 : i32
    %c0_i32_1 = arith.constant 0 : i32
    return %c0_i32, %c0_i32_0 : i32, i32
  }
  func.func @transform_2(%arg0: i32) -> (i32, i32) {
    %c0_i32 = arith.constant 0 : i32
    %c0_i32_0 = arith.constant 0 : i32
    %c0_i32_1 = arith.constant 0 : i32
    return %c0_i32, %c0_i32_0 : i32, i32
  }
  func.func @transform_3(%arg0: i32) -> (i32, i32) {
    %c0_i32 = arith.constant 0 : i32
    %c0_i32_0 = arith.constant 0 : i32
    %c0_i32_1 = arith.constant 0 : i32
    return %c0_i32, %c0_i32_0 : i32, i32
  }
  func.func @transform_4(%arg0: i32) -> (i32, i32) {
    %c0_i32 = arith.constant 0 : i32
    %c0_i32_0 = arith.constant 0 : i32
    %c0_i32_1 = arith.constant 0 : i32
    return %c0_i32, %c0_i32_0 : i32, i32
  }
  func.func @transform_5(%arg0: i32) -> (i32, i32) {
    %c0_i32 = arith.constant 0 : i32
    %c0_i32_0 = arith.constant 0 : i32
    %c0_i32_1 = arith.constant 0 : i32
    return %c0_i32, %c0_i32_0 : i32, i32
  }
  func.func @transform_6(%arg0: i32) -> (i32, i32) {
    %c0_i32 = arith.constant 0 : i32
    %c0_i32_0 = arith.constant 0 : i32
    %c0_i32_1 = arith.constant 0 : i32
    return %c0_i32, %c0_i32_0 : i32, i32
  }
  func.func @transform_7(%arg0: i32) -> (i32, i32) {
    %c0_i32 = arith.constant 0 : i32
    %c0_i32_0 = arith.constant 0 : i32
    %c0_i32_1 = arith.constant 0 : i32
    return %c0_i32, %c0_i32_0 : i32, i32
  }
}

</mosaic_0001>

<llo_original>
// kernel: mynn_forward.1
$region0: #{mynn_forward.1}
  #allocation0 [shape = 'u32[]', space=smem, size = 0x4, offset = 0x4, fixed_abs, tag = 'smem constant byte address 0x4 - core index']
  #allocation1 [shape = 'u32[72,128]{1,0:T(1,128)}', space=vmem, size = 0x9000, scoped, tag = 'internal scratch']
  %s0 = inlined_call_operand.vmem [shape: bf16[8,128], index: 0, kind: input, shape index: {}]
  %s1 = inlined_call_operand.hbm [shape: bf16[128,128], index: 1, kind: input, shape index: {}]
  %s2 = inlined_call_operand.vmem [shape: f32[1,128], index: 2, kind: input, shape index: {}]
  %s3 = inlined_call_operand.hbm [shape: bf16[128,128], index: 3, kind: input, shape index: {}]
  %s4 = inlined_call_operand.vmem [shape: f32[1,128], index: 4, kind: input, shape index: {}]
  %s5 = inlined_call_operand.hbm [shape: bf16[128,128], index: 5, kind: input, shape index: {}]
  %s6 = inlined_call_operand.vmem [shape: f32[1,128], index: 6, kind: input, shape index: {}]
  %s7 = inlined_call_operand.hbm [shape: f32[8,128], index: 7, kind: output, shape index: {}]
  %s8 = sld [smem:[#allocation0]]
  $region50: #{mynn_forward.1} parent=0
    _
  %s10 = ssub.s32 1, %s8
  %s11 = scalar_select 0, %s10, %s8
  $region1: #{mynn_forward.1} parent=0
    #allocation2 [shape = 'u8[32768]{0}', space=vmem, size = 0x8000, scoped, tag = 'input window, operand 1, single buffered']
    #allocation3 [shape = 's32[1]{0}', space=sflag, size = 0x4, scoped, tag = 'scoped memory for mynn_forward.1']
    #allocation4 [shape = 's32[1]{0}', space=sflag, size = 0x4, scoped, tag = 'scoped memory for mynn_forward.1']
    #allocation5 [shape = 'u8[32768]{0}', space=vmem, size = 0x8000, scoped, tag = 'input window, operand 3, single buffered']
    #allocation6 [shape = 's32[1]{0}', space=sflag, size = 0x4, scoped, tag = 'scoped memory for mynn_forward.1']
    #allocation7 [shape = 'u8[32768]{0}', space=vmem, size = 0x8000, scoped, tag = 'input window, operand 5, single buffered']
    #allocation8 [shape = 'u8[4096]{0}', space=vmem, size = 0x1000, scoped, tag = 'output window, operand 0, single buffered']
    %12 = vsyncpa [#allocation3], 0
    %13 = vsyncpa [#allocation6], 0
    %14 = vsyncpa [#allocation4], 0
    // Predicated region
    $region2: #{mynn_forward.1} parent=1 // pred_check
      _
    $region3: #{mynn_forward.1} parent=1 // pred_check_branch
      %16 = sbr.rel (0) target = $region5
    $region4: #{mynn_forward.1} parent=1 // pred_region
      _
    $region5: #{mynn_forward.1} parent=1 // pred_fallthru
      _
    // Predicated region
    $region6: #{mynn_forward.1} parent=1 // pred_check
      _
    $region7: #{mynn_forward.1} parent=1 // pred_check_branch
      %18 = sbr.rel (0) target = $region9
    $region8: #{mynn_forward.1} parent=1 // pred_region
      %20 = vsyncadd [#allocation3], 0
      %s21 = sshll.u32 %s1, 4
      %s22 = int_to_ptr.hbm [resolvable:$true] %s21
      %s23 = sshll.u32 [#allocation2], 4
      %s24 = int_to_ptr.vmem [resolvable:$true] %s23
      %29 = dma.hbm_to_vmem [thread:$0]  %s22, 1024, %s24, [#allocation3], 64, 64, 4
    $region9: #{mynn_forward.1} parent=1 // pred_fallthru
      _
    // Predicated region
    $region10: #{mynn_forward.1} parent=1 // pred_check
      _
    $region11: #{mynn_forward.1} parent=1 // pred_check_branch
      %31 = sbr.rel (0) target = $region13
    $region12: #{mynn_forward.1} parent=1 // pred_region
      _
    $region13: #{mynn_forward.1} parent=1 // pred_fallthru
      _
    // Predicated region
    $region14: #{mynn_forward.1} parent=1 // pred_check
      _
    $region15: #{mynn_forward.1} parent=1 // pred_check_branch
      %33 = sbr.rel (0) target = $region17
    $region16: #{mynn_forward.1} parent=1 // pred_region
      %35 = vsyncadd [#allocation6], 0
      %s36 = sshll.u32 %s3, 4
      %s37 = int_to_ptr.hbm [resolvable:$true] %s36
      %s38 = sshll.u32 [#allocation5], 4
      %s39 = int_to_ptr.vmem [resolvable:$true] %s38
      %44 = dma.hbm_to_vmem [thread:$0]  %s37, 1024, %s39, [#allocation6], 64, 64, 4
    $region17: #{mynn_forward.1} parent=1 // pred_fallthru
      _
    // Predicated region
    $region18: #{mynn_forward.1} parent=1 // pred_check
      _
    $region19: #{mynn_forward.1} parent=1 // pred_check_branch
      %46 = sbr.rel (0) target = $region21
    $region20: #{mynn_forward.1} parent=1 // pred_region
      _
    $region21: #{mynn_forward.1} parent=1 // pred_fallthru
      _
    // Predicated region
    $region22: #{mynn_forward.1} parent=1 // pred_check
      _
    $region23: #{mynn_forward.1} parent=1 // pred_check_branch
      %48 = sbr.rel (0) target = $region25
    $region24: #{mynn_forward.1} parent=1 // pred_region
      %50 = vsyncadd [#allocation6], 0
      %s51 = sshll.u32 %s5, 4
      %s52 = int_to_ptr.hbm [resolvable:$true] %s51
      %s53 = sshll.u32 [#allocation7], 4
      %s54 = int_to_ptr.vmem [resolvable:$true] %s53
      %59 = dma.hbm_to_vmem [thread:$0]  %s52, 1024, %s54, [#allocation6], 64, 64, 4
    $region25: #{mynn_forward.1} parent=1 // pred_fallthru
      _
    // Predicated region
    $region26: #{mynn_forward.1} parent=1 // pred_check
      _
    $region27: #{mynn_forward.1} parent=1 // pred_check_branch
      %61 = sbr.rel (0) target = $region29
    $region28: #{mynn_forward.1} parent=1 // pred_region
      _
    $region29: #{mynn_forward.1} parent=1 // pred_fallthru
      _
    // Predicated region
    $region30: #{mynn_forward.1} parent=1 // pred_check
      _
    $region31: #{mynn_forward.1} parent=1 // pred_check_branch
      %63 = sbr.rel (0) target = $region33
    $region32: #{mynn_forward.1} parent=1 // pred_region
      %65 = dma.done [#allocation3], 1024
    $region33: #{mynn_forward.1} parent=1 // pred_fallthru
      _
    // Predicated region
    $region34: #{mynn_forward.1} parent=1 // pred_check
      _
    $region35: #{mynn_forward.1} parent=1 // pred_check_branch
      %67 = sbr.rel (0) target = $region37
    $region36: #{mynn_forward.1} parent=1 // pred_region
      %69 = dma.done [#allocation6], 1024
    $region37: #{mynn_forward.1} parent=1 // pred_fallthru
      _
    // Predicated region
    $region38: #{mynn_forward.1} parent=1 // pred_check
      _
    $region39: #{mynn_forward.1} parent=1 // pred_check_branch
      %71 = sbr.rel (0) target = $region41
    $region40: #{mynn_forward.1} parent=1 // pred_region
      %73 = dma.done [#allocation6], 1024
    $region41: #{mynn_forward.1} parent=1 // pred_fallthru
      _
    %v74 = vld [vmem:[%s0] sm:$0xf]
    %v75 = vld [vmem:[#allocation2] sm:$0xf]
    %v76 = vld [vmem:[#allocation2 + $0x4] sm:$0xf]
    %v77 = vld [vmem:[#allocation2 + $0x8] sm:$0xf]
    %v78 = vld [vmem:[#allocation2 + $0xc] sm:$0xf]
    %v79 = vld [vmem:[#allocation2 + $0x10] sm:$0xf]
    %v80 = vld [vmem:[#allocation2 + $0x14] sm:$0xf]
    %v81 = vld [vmem:[#allocation2 + $0x18] sm:$0xf]
    %v82 = vld [vmem:[#allocation2 + $0x1c] sm:$0xf]
    %v83 = vld [vmem:[#allocation2 + $0x20] sm:$0xf]
    %v84 = vld [vmem:[#allocation2 + $0x24] sm:$0xf]
    %v85 = vld [vmem:[#allocation2 + $0x28] sm:$0xf]
    %v86 = vld [vmem:[#allocation2 + $0x2c] sm:$0xf]
    %v87 = vld [vmem:[#allocation2 + $0x30] sm:$0xf]
    %v88 = vld [vmem:[#allocation2 + $0x34] sm:$0xf]
    %v89 = vld [vmem:[#allocation2 + $0x38] sm:$0xf]
    %v90 = vld [vmem:[#allocation2 + $0x3c] sm:$0xf]
    %v91 = vld [vmem:[%s2] sm:$0x1]
    %v93 = vperm.slane %v91, 0
    %v111 = vunpack.c.l.b16 %v75
    %v112 = vunpack.c.l.b16 %v76
    %v113 = vunpack.c.l.b16 %v77
    %v114 = vunpack.c.l.b16 %v78
    %v115 = vunpack.c.l.b16 %v79
    %v116 = vunpack.c.l.b16 %v80
    %v117 = vunpack.c.l.b16 %v81
    %v118 = vunpack.c.l.b16 %v82
    %v119 = vunpack.c.l.b16 %v83
    %v120 = vunpack.c.l.b16 %v84
    %v121 = vunpack.c.l.b16 %v85
    %v122 = vunpack.c.l.b16 %v86
    %v123 = vunpack.c.l.b16 %v87
    %v124 = vunpack.c.l.b16 %v88
    %v125 = vunpack.c.l.b16 %v89
    %v126 = vunpack.c.l.b16 %v90
    %v127 = vpack.c.b16 %v112, %v111
    %v128 = vpack.c.b16 %v114, %v113
    %v129 = vpack.c.b16 %v116, %v115
    %v130 = vpack.c.b16 %v118, %v117
    %v131 = vpack.c.b16 %v120, %v119
    %v132 = vpack.c.b16 %v122, %v121
    %v133 = vpack.c.b16 %v124, %v123
    %v134 = vpack.c.b16 %v126, %v125
    %143 = vmatpush.bf16.msra.mxu0 %v134
    %144 = vmatpush.bf16.msra.mxu0 %v133
    %145 = vmatpush.bf16.msra.mxu0 %v132
    %146 = vmatpush.bf16.msra.mxu0 %v131
    %147 = vmatpush.bf16.msra.mxu0 %v130
    %148 = vmatpush.bf16.msra.mxu0 %v129
    %149 = vmatpush.bf16.msra.mxu0 %v128
    %150 = vmatpush.bf16.msra.mxu0 %v127
    %151 = vmatmul.bf16.gmra.mxu0 %v74
    %v152 = vpop.f32.mrf.mxu0
    %v153 = vadd.f32 %v93, %v152
    %v154 = vpop.f32.mrf.mxu0
    %155 = vdwg.mxu0
    %vm156 = vcmp.gt.f32.partialorder %v153, 0.0
    %v157 = vmin.f32 %v153, 0.0
    %v158 = vmul.f32 %v157, 1.442695
    %v159 = vpow.pop %v158
    %v160 = vsub.f32 %v159, 1.0
    %v161 = vmul.f32 %v160, 0.95
    %v162 = vsel %vm156, %v153, %v161
    %v163 = vpack.c.bf16 %v162, %v162
    %v164 = vld [vmem:[#allocation5] sm:$0xf]
    %v165 = vld [vmem:[#allocation5 + $0x4] sm:$0xf]
    %v166 = vld [vmem:[#allocation5 + $0x8] sm:$0xf]
    %v167 = vld [vmem:[#allocation5 + $0xc] sm:$0xf]
    %v168 = vld [vmem:[#allocation5 + $0x10] sm:$0xf]
    %v169 = vld [vmem:[#allocation5 + $0x14] sm:$0xf]
    %v170 = vld [vmem:[#allocation5 + $0x18] sm:$0xf]
    %v171 = vld [vmem:[#allocation5 + $0x1c] sm:$0xf]
    %v172 = vld [vmem:[#allocation5 + $0x20] sm:$0xf]
    %v173 = vld [vmem:[#allocation5 + $0x24] sm:$0xf]
    %v174 = vld [vmem:[#allocation5 + $0x28] sm:$0xf]
    %v175 = vld [vmem:[#allocation5 + $0x2c] sm:$0xf]
    %v176 = vld [vmem:[#allocation5 + $0x30] sm:$0xf]
    %v177 = vld [vmem:[#allocation5 + $0x34] sm:$0xf]
    %v178 = vld [vmem:[#allocation5 + $0x38] sm:$0xf]
    %v179 = vld [vmem:[#allocation5 + $0x3c] sm:$0xf]
    %v180 = vld [vmem:[%s4] sm:$0x1]
    %v182 = vperm.slane %v180, 0
    %v200 = vunpack.c.l.b16 %v164
    %v201 = vunpack.c.l.b16 %v165
    %v202 = vunpack.c.l.b16 %v166
    %v203 = vunpack.c.l.b16 %v167
    %v204 = vunpack.c.l.b16 %v168
    %v205 = vunpack.c.l.b16 %v169
    %v206 = vunpack.c.l.b16 %v170
    %v207 = vunpack.c.l.b16 %v171
    %v208 = vunpack.c.l.b16 %v172
    %v209 = vunpack.c.l.b16 %v173
    %v210 = vunpack.c.l.b16 %v174
    %v211 = vunpack.c.l.b16 %v175
    %v212 = vunpack.c.l.b16 %v176
    %v213 = vunpack.c.l.b16 %v177
    %v214 = vunpack.c.l.b16 %v178
    %v215 = vunpack.c.l.b16 %v179
    %v216 = vpack.c.b16 %v201, %v200
    %v217 = vpack.c.b16 %v203, %v202
    %v218 = vpack.c.b16 %v205, %v204
    %v219 = vpack.c.b16 %v207, %v206
    %v220 = vpack.c.b16 %v209, %v208
    %v221 = vpack.c.b16 %v211, %v210
    %v222 = vpack.c.b16 %v213, %v212
    %v223 = vpack.c.b16 %v215, %v214
    %232 = vmatpush.bf16.msra.mxu0 %v223
    %233 = vmatpush.bf16.msra.mxu0 %v222
    %234 = vmatpush.bf16.msra.mxu0 %v221
    %235 = vmatpush.bf16.msra.mxu0 %v220
    %236 = vmatpush.bf16.msra.mxu0 %v219
    %237 = vmatpush.bf16.msra.mxu0 %v218
    %238 = vmatpush.bf16.msra.mxu0 %v217
    %239 = vmatpush.bf16.msra.mxu0 %v216
    %240 = vmatmul.bf16.gmra.mxu0 %v163
    %v241 = vpop.f32.mrf.mxu0
    %v242 = vadd.f32 %v182, %v241
    %v243 = vpop.f32.mrf.mxu0
    %244 = vdwg.mxu0
    %v245 = vmax.f32 %v242, 0.0
    %v246 = vpack.c.bf16 %v245, %v245
    %v247 = vld [vmem:[#allocation7] sm:$0xf]
    %v248 = vld [vmem:[#allocation7 + $0x4] sm:$0xf]
    %v249 = vld [vmem:[#allocation7 + $0x8] sm:$0xf]
    %v250 = vld [vmem:[#allocation7 + $0xc] sm:$0xf]
    %v251 = vld [vmem:[#allocation7 + $0x10] sm:$0xf]
    %v252 = vld [vmem:[#allocation7 + $0x14] sm:$0xf]
    %v253 = vld [vmem:[#allocation7 + $0x18] sm:$0xf]
    %v254 = vld [vmem:[#allocation7 + $0x1c] sm:$0xf]
    %v255 = vld [vmem:[#allocation7 + $0x20] sm:$0xf]
    %v256 = vld [vmem:[#allocation7 + $0x24] sm:$0xf]
    %v257 = vld [vmem:[#allocation7 + $0x28] sm:$0xf]
    %v258 = vld [vmem:[#allocation7 + $0x2c] sm:$0xf]
    %v259 = vld [vmem:[#allocation7 + $0x30] sm:$0xf]
    %v260 = vld [vmem:[#allocation7 + $0x34] sm:$0xf]
    %v261 = vld [vmem:[#allocation7 + $0x38] sm:$0xf]
    %v262 = vld [vmem:[#allocation7 + $0x3c] sm:$0xf]
    %v263 = vld [vmem:[%s6] sm:$0x1]
    %v265 = vperm.slane %v263, 0
    %v283 = vunpack.c.l.b16 %v247
    %v284 = vunpack.c.l.b16 %v248
    %v285 = vunpack.c.l.b16 %v249
    %v286 = vunpack.c.l.b16 %v250
    %v287 = vunpack.c.l.b16 %v251
    %v288 = vunpack.c.l.b16 %v252
    %v289 = vunpack.c.l.b16 %v253
    %v290 = vunpack.c.l.b16 %v254
    %v291 = vunpack.c.l.b16 %v255
    %v292 = vunpack.c.l.b16 %v256
    %v293 = vunpack.c.l.b16 %v257
    %v294 = vunpack.c.l.b16 %v258
    %v295 = vunpack.c.l.b16 %v259
    %v296 = vunpack.c.l.b16 %v260
    %v297 = vunpack.c.l.b16 %v261
    %v298 = vunpack.c.l.b16 %v262
    %v299 = vpack.c.b16 %v284, %v283
    %v300 = vpack.c.b16 %v286, %v285
    %v301 = vpack.c.b16 %v288, %v287
    %v302 = vpack.c.b16 %v290, %v289
    %v303 = vpack.c.b16 %v292, %v291
    %v304 = vpack.c.b16 %v294, %v293
    %v305 = vpack.c.b16 %v296, %v295
    %v306 = vpack.c.b16 %v298, %v297
    %315 = vmatpush.bf16.msra.mxu0 %v306
    %316 = vmatpush.bf16.msra.mxu0 %v305
    %317 = vmatpush.bf16.msra.mxu0 %v304
    %318 = vmatpush.bf16.msra.mxu0 %v303
    %319 = vmatpush.bf16.msra.mxu0 %v302
    %320 = vmatpush.bf16.msra.mxu0 %v301
    %321 = vmatpush.bf16.msra.mxu0 %v300
    %322 = vmatpush.bf16.msra.mxu0 %v299
    %323 = vmatmul.bf16.gmra.mxu0 %v246
    %v324 = vpop.f32.mrf.mxu0
    %v325 = vadd.f32 %v265, %v324
    %v326 = vpop.f32.mrf.mxu0
    %327 = vdwg.mxu0
    %vm328 = vcmp.gt.f32.partialorder %v325, 0.0
    %v329 = vmin.f32 %v325, 0.0
    %v330 = vmul.f32 %v329, 1.442695
    %v331 = vpow.pop %v330
    %v332 = vsub.f32 %v331, 1.0
    %v333 = vmul.f32 %v332, 1.25
    %v334 = vsel %vm328, %v325, %v333
    %v335 = vlaneseq
    %v336 = vshrl.u32 %v335, 7
    %vm337 = vcmp.lt.s32.totalorder %v336, 8
    %v338 = vsel %vm337, %v334, -1e+30
    %v339 = vrot.slane %v338, 4
    %v340 = vmax.f32 %v338, %v339
    %v341 = vrot.slane %v340, 2
    %v342 = vmax.f32 %v340, %v341
    %v343 = vrot.slane %v342, 1
    %v344 = vmax.f32 %v342, %v343
    %v345 = vsub.f32 %v338, %v344
    %v346 = vmul.f32 %v345, 1.442695
    %v347 = vpow.pop %v346
    %v348 = vrot.slane %v347, 4
    %v349 = vadd.f32 %v347, %v348
    %v350 = vrot.slane %v349, 2
    %v351 = vadd.f32 %v349, %v350
    %v352 = vrot.slane %v351, 1
    %v353 = vadd.f32 %v351, %v352
    %v354 = vrcp.pop %v353
    %v355 = vmul.f32 %v347, %v354
    %356 = vst [vmem:[#allocation8] sm:$0xff] %v355
    // Predicated region
    $region42: #{mynn_forward.1} parent=1 // pred_check
      _
    $region43: #{mynn_forward.1} parent=1 // pred_check_branch
      %358 = sbr.rel (0) target = $region45
    $region44: #{mynn_forward.1} parent=1 // pred_region
      %360 = vsyncadd [#allocation4], 0
      %s362 = sshll.u32 [#allocation8], 4
      %s363 = int_to_ptr.vmem [resolvable:$true] %s362
      %s364 = sshll.u32 %s7, 4
      %s365 = int_to_ptr.hbm [resolvable:$true] %s364
      %367 = dma.vmem_to_hbm [thread:$0]  %s363, 128, %s365, [#allocation4]
    $region45: #{mynn_forward.1} parent=1 // pred_fallthru
      _
    // Predicated region
    $region46: #{mynn_forward.1} parent=1 // pred_check
      _
    $region47: #{mynn_forward.1} parent=1 // pred_check_branch
      %369 = sbr.rel (0) target = $region49
    $region48: #{mynn_forward.1} parent=1 // pred_region
      %371 = dma.done [#allocation4], 128
    $region49: #{mynn_forward.1} parent=1 // pred_fallthru
      _
    %372 = vsyncpa [#allocation3], 1
    %373 = vsyncpa [#allocation6], 1
    %374 = vsyncpa [#allocation4], 1

</llo_original>
